<compile_context>
chip_gen: v7x
topology: tpu7x:2x2x1
jax: 0.10.0
libtpu: 0.0.40
codegen_flags: <defaults>
</compile_context>

<pallas_src>
import functools

import jax
import jax.numpy as jnp
import numpy as np
from jax.experimental import pallas as pl
from jax.experimental.pallas import tpu as pltpu


def _detection_kernel(pred_ref, aux_ref, out_ref):
    # pred/out block: (4, b_tile, M); aux block: (4, 1, M) resident constants.
    #   rows 0,1 -> sigmoid(logit) + {grid_x, grid_y-quirk (box-attr index)}
    #   rows 2,3 -> exp(logit)     * {anchor_w, anchor_h} (already stride-scaled)
    sig = jax.nn.sigmoid(pred_ref[0:2])      # only x, y go through sigmoid
    ex = jnp.exp(pred_ref[2:4])              # only w, h go through exp
    out_ref[0:2] = sig + aux_ref[0:2]        # (2,1,M) broadcast over batch sublanes
    out_ref[2:4] = ex * aux_ref[2:4]


def _pick_batch_tile(batch, m):
    """Batch rows per grid step.

    Whole batch when the block stays small; otherwise the largest
    multiple-of-8 divisor of `batch` that keeps one (4, b_tile, M) f32 block
    under ~4 MiB (double-buffered in+out is still far below every chip's
    scoped VMEM budget, including v7x's).
    """
    cap = max(8, (4 << 20) // (4 * m * 4))
    if batch <= cap:
        return batch
    t = cap - cap % 8
    while t >= 8:
        if batch % t == 0:
            return t
        t -= 8
    return batch  # no aligned divisor -> fall back to a single big block


@functools.partial(jax.jit, static_argnames=("grid_size", "num_anchors", "box_attr"))
def _forward_impl(prediction, aux, *, grid_size, num_anchors, box_attr):
    B = prediction.shape[0]
    G = grid_size
    M = num_anchors * box_attr * G

    # Same .view as the reference; slice the 4 coord planes and flatten to a
    # lane-dense (4, B, M) slab (one fused slice+transpose under jit — the
    # only pre-kernel HBM pass).
    pred5 = prediction.reshape(B, num_anchors, box_attr, G, G)
    pred_t = (jnp.moveaxis(pred5[..., :4], -1, 0)
              .reshape(4, B, M).astype(jnp.float32))

    b_tile = _pick_batch_tile(B, M)
    grid = (B // b_tile,)

    out = pl.pallas_call(
        _detection_kernel,
        out_shape=jax.ShapeDtypeStruct((4, B, M), jnp.float32),
        grid_spec=pltpu.PrefetchScalarGridSpec(
            num_scalar_prefetch=0,
            grid=grid,
            in_specs=[
                pl.BlockSpec((4, b_tile, M), lambda i: (0, i, 0)),
                pl.BlockSpec((4, 1, M), lambda i: (0, 0, 0)),  # constant -> fetched once
            ],
            out_specs=pl.BlockSpec((4, b_tile, M), lambda i: (0, i, 0)),
        ),
        compiler_params=pltpu.CompilerParams(
            dimension_semantics=("parallel",)),  # v7x: batch tiles split across 2 TCs
    )(pred_t, aux)

    # Reference returns pred_boxes as (B, A, box_attr, G, 4): free reshape plus
    # one small transpose (the merged (4, ...) kernel output replaces the old
    # 4-way stack).
    return jnp.moveaxis(out.reshape(4, B, num_anchors, box_attr, G), 0, -1)


def detection_layer_forward(prediction, anchors, img_size, num_classes):
    """Pallas implementation of DetectionLayer.forward (returns pred_boxes)."""
    B, C, G, _ = prediction.shape
    anchors = np.asarray(anchors, dtype=np.float32)  # fixed at module construction
    A = anchors.shape[0]
    box_attr = 5 + num_classes
    assert C == A * box_attr
    # The reference's (buggy-but-reproduced) broadcasting requires this:
    assert box_attr == G, "reference semantics require grid_size == 5 + num_classes"
    stride = img_size // G
    M = A * box_attr * G

    # Per-lane constants over the flattened (a, attr, i) axis, built once on host:
    #   row 0: grid_x add  (= i, the last spatial index)
    #   row 1: grid_y add  (= attr, the box-attr index — reference quirk)
    #   row 2/3: stride-scaled anchor_w / anchor_h per anchor a
    m_idx = np.arange(M)
    i_idx = m_idx % G
    attr_idx = (m_idx // G) % box_attr
    a_idx = m_idx // (G * box_attr)
    scaled = anchors / float(stride)
    aux = np.stack(
        [i_idx.astype(np.float32), attr_idx.astype(np.float32),
         scaled[a_idx, 0], scaled[a_idx, 1]],
        axis=0,
    ).reshape(4, 1, M)

    return _forward_impl(prediction, jnp.asarray(aux),
                         grid_size=G, num_anchors=A, box_attr=box_attr)


def detection_layer_reference(prediction, anchors, img_size, num_classes):
    """Pure-JAX mirror of the PyTorch forward, for verification."""
    B, C, G, _ = prediction.shape
    anchors = jnp.asarray(anchors, dtype=jnp.float32)
    A = anchors.shape[0]
    box_attr = 5 + num_classes
    stride = img_size // G
    pred5 = prediction.reshape(B, A, box_attr, G, G)
    x = jax.nn.sigmoid(pred5[..., 0])
    y = jax.nn.sigmoid(pred5[..., 1])
    w = pred5[..., 2]
    h = pred5[..., 3]
    scaled = anchors / float(stride)
    gx = jnp.arange(G, dtype=jnp.float32).reshape(1, 1, 1, G)
    gy = jnp.arange(G, dtype=jnp.float32).reshape(1, 1, G, 1)
    aw = scaled[:, 0].reshape(1, A, 1, 1)
    ah = scaled[:, 1].reshape(1, A, 1, 1)
    return jnp.stack([x + gx, y + gy, jnp.exp(w) * aw, jnp.exp(h) * ah], axis=-1)


if __name__ == "__main__":
    # Unused members of the module (mse_loss, ce_loss, lambda_coord,
    # lambda_noobj), the print() calls, and the unused confidence / pred_class
    # sigmoids are dead code in forward and intentionally not computed.
    key = jax.random.PRNGKey(0)
    B = 2
    num_classes = 3
    box_attr = 5 + num_classes          # 8
    G = box_attr                        # required by the reference broadcasting
    img_size = 32                       # stride = 4
    anchors = jnp.array([[10.0, 13.0], [16.0, 30.0], [33.0, 23.0]], dtype=jnp.float32)
    A = anchors.shape[0]

    prediction = jax.random.normal(key, (B, A * box_attr, G, G), dtype=jnp.float32)

    out = detection_layer_forward(prediction, anchors, img_size, num_classes)
    out = jax.block_until_ready(out)

    ref = detection_layer_reference(prediction, anchors, img_size, num_classes)
    assert out.shape == (B, A, box_attr, G, 4), out.shape
    assert out.dtype == jnp.float32
    assert jnp.allclose(out, ref, atol=1e-3, rtol=1e-3), "mismatch vs reference"

    print("KERNEL_OK")
</pallas_src>

<mosaic_0001>
module attributes {stable_mosaic.version = 11 : i64} {
  func.func @_detection_kernel(%arg0: i32, %arg1: memref<4x2x192xf32, #tpu.memory_space<vmem>>, %arg2: memref<4x1x192xf32, #tpu.memory_space<vmem>>, %arg3: memref<4x2x192xf32, #tpu.memory_space<vmem>>) attributes {dimension_semantics = [#tpu.dimension_semantics<parallel>], iteration_bounds = array<i64: 1>, scalar_prefetch = 0 : i64, scratch_operands = 0 : i64, tpu.core_type = #tpu.core_type<tc>, window_params = [{transform_indices = @transform_0, window_bounds = array<i64: 4, 2, 192>}, {pipeline_mode = #tpu.pipeline_mode<synchronous>, transform_indices = @transform_1, window_bounds = array<i64: 4, 1, 192>}, {transform_indices = @transform_2, window_bounds = array<i64: 4, 2, 192>}]} {
    %c0 = arith.constant 0 : index
    %c0_0 = arith.constant 0 : index
    %c0_1 = arith.constant 0 : index
    %0 = vector.load %arg1[%c0, %c0_0, %c0_1] : memref<4x2x192xf32, #tpu.memory_space<vmem>>, vector<2x2x192xf32>
    %1 = arith.negf %0 : vector<2x2x192xf32>
    %2 = math.exp %1 : vector<2x2x192xf32>
    %cst = arith.constant 1.000000e+00 : f32
    %3 = vector.broadcast %cst : f32 to vector<2x2x192xf32>
    %4 = arith.addf %3, %2 : vector<2x2x192xf32>
    %5 = arith.divf %3, %4 : vector<2x2x192xf32>
    %c2 = arith.constant 2 : index
    %c0_2 = arith.constant 0 : index
    %c0_3 = arith.constant 0 : index
    %6 = vector.load %arg1[%c2, %c0_2, %c0_3] : memref<4x2x192xf32, #tpu.memory_space<vmem>>, vector<2x2x192xf32>
    %7 = math.exp %6 : vector<2x2x192xf32>
    %c0_4 = arith.constant 0 : index
    %c0_5 = arith.constant 0 : index
    %c0_6 = arith.constant 0 : index
    %8 = vector.load %arg2[%c0_4, %c0_5, %c0_6] : memref<4x1x192xf32, #tpu.memory_space<vmem>>, vector<2x1x192xf32>
    %9 = vector.broadcast %8 : vector<2x1x192xf32> to vector<2x2x192xf32>
    %10 = arith.addf %5, %9 : vector<2x2x192xf32>
    %c0_7 = arith.constant 0 : index
    %c0_8 = arith.constant 0 : index
    %c0_9 = arith.constant 0 : index
    %11 = vector.load %arg3[%c0_7, %c0_8, %c0_9] : memref<4x2x192xf32, #tpu.memory_space<vmem>>, vector<2x2x192xf32>
    tpu.vector_store %arg3[%c0_7, %c0_8, %c0_9], %10 {strides = array<i32>} : memref<4x2x192xf32, #tpu.memory_space<vmem>>, vector<2x2x192xf32>,
    %c2_10 = arith.constant 2 : index
    %c0_11 = arith.constant 0 : index
    %c0_12 = arith.constant 0 : index
    %12 = vector.load %arg2[%c2_10, %c0_11, %c0_12] : memref<4x1x192xf32, #tpu.memory_space<vmem>>, vector<2x1x192xf32>
    %13 = vector.broadcast %12 : vector<2x1x192xf32> to vector<2x2x192xf32>
    %14 = arith.mulf %7, %13 : vector<2x2x192xf32>
    %c2_13 = arith.constant 2 : index
    %c0_14 = arith.constant 0 : index
    %c0_15 = arith.constant 0 : index
    %15 = vector.load %arg3[%c2_13, %c0_14, %c0_15] : memref<4x2x192xf32, #tpu.memory_space<vmem>>, vector<2x2x192xf32>
    tpu.vector_store %arg3[%c2_13, %c0_14, %c0_15], %14 {strides = array<i32>} : memref<4x2x192xf32, #tpu.memory_space<vmem>>, vector<2x2x192xf32>,
    return
  }
  func.func @transform_0(%arg0: i32) -> (i32, i32, i32) {
    %c0_i32 = arith.constant 0 : i32
    %c0_i32_0 = arith.constant 0 : i32
    %c0_i32_1 = arith.constant 0 : i32
    return %c0_i32, %arg0, %c0_i32_0 : i32, i32, i32
  }
  func.func @transform_1(%arg0: i32) -> (i32, i32, i32) {
    %c0_i32 = arith.constant 0 : i32
    %c0_i32_0 = arith.constant 0 : i32
    %c0_i32_1 = arith.constant 0 : i32
    %c0_i32_2 = arith.constant 0 : i32
    return %c0_i32, %c0_i32_0, %c0_i32_1 : i32, i32, i32
  }
  func.func @transform_2(%arg0: i32) -> (i32, i32, i32) {
    %c0_i32 = arith.constant 0 : i32
    %c0_i32_0 = arith.constant 0 : i32
    %c0_i32_1 = arith.constant 0 : i32
    return %c0_i32, %arg0, %c0_i32_0 : i32, i32, i32
  }
}

</mosaic_0001>

<llo_original>
// kernel: _forward_impl.1
$region0: #{_forward_impl.1}
  #allocation0 [shape = 'u32[]', space=smem, size = 0x4, offset = 0x4, fixed_abs, tag = 'smem constant byte address 0x4 - core index']
  #allocation1 [shape = 'u32[144,128]{1,0:T(1,128)}', space=vmem, size = 0x12000, scoped, tag = 'internal scratch']
  %s0 = inlined_call_operand.vmem [shape: f32[4,2,192], index: 0, kind: input, shape index: {}]
  %s1 = inlined_call_operand.vmem [shape: f32[4,1,192], index: 1, kind: input, shape index: {}]
  %s2 = inlined_call_operand.vmem [shape: f32[4,2,192], index: 2, kind: output, shape index: {}]
  %s3 = sld [smem:[#allocation0]]
  $region18: #{_forward_impl.1} parent=0
    _
  %s5 = ssub.s32 1, %s3
  %s6 = scalar_select 0, %s5, %s3
  // Predicated region
  $region2: #{_forward_impl.1} parent=0 // pred_check
    _
  $region3: #{_forward_impl.1} parent=0 // pred_check_branch
    %8 = sbr.rel (0) target = $region5
  $region4: #{_forward_impl.1} parent=0 // pred_region
    _
  $region5: #{_forward_impl.1} parent=0 // pred_fallthru
    _
  // Predicated region
  $region6: #{_forward_impl.1} parent=0 // pred_check
    _
  $region7: #{_forward_impl.1} parent=0 // pred_check_branch
    %10 = sbr.rel (0) target = $region9
  $region8: #{_forward_impl.1} parent=0 // pred_region
    _
  $region9: #{_forward_impl.1} parent=0 // pred_fallthru
    _
  %v11 = vld [vmem:[%s0] sm:$0xf]
  %v12 = vld [vmem:[%s0 + $0x4] sm:$0xf]
  %v13 = vxor.u32 %v11, 2147483648
  %v14 = vxor.u32 %v12, 2147483648
  %v15 = vmul.f32 %v13, 1.442695
  %v16 = vpow.pop %v15
  %v17 = vmul.f32 %v14, 1.442695
  %v18 = vpow.pop %v17
  %v19 = vadd.f32 %v16, 1.0
  %v20 = vadd.f32 %v18, 1.0
  %v21 = vrcp.pop %v19
  %v22 = vmul.f32 1.0, %v21
  %v23 = vrcp.pop %v20
  %v24 = vmul.f32 1.0, %v23
  %s25 = scalar_lea.vmem %s0, 8
  %v26 = vld [vmem:[%s25] sm:$0xf]
  %v27 = vld [vmem:[%s25 + $0x4] sm:$0xf]
  %v28 = vmul.f32 %v26, 1.442695
  %v29 = vpow.pop %v28
  %v30 = vmul.f32 %v27, 1.442695
  %v31 = vpow.pop %v30
  %v32 = vld [vmem:[%s1] sm:$0x3]
  %v33 = vld [vmem:[%s1 + $0x2] sm:$0x3]
  %v36 = vlaneseq
  %v37 = vshrl.u32 %v36, 7
  %v38 = vsub.s32 0, %v37
  %v39 = vrot.slane %v32, %v38
  %v40 = vlaneseq
  %v41 = vshrl.u32 %v40, 7
  %v42 = vsub.s32 1, %v41
  %v43 = vrot.slane %v32, %v42
  %v44 = vlaneseq
  %v45 = vshrl.u32 %v44, 7
  %v46 = vsub.s32 0, %v45
  %v47 = vrot.slane %v33, %v46
  %v48 = vlaneseq
  %v49 = vshrl.u32 %v48, 7
  %v50 = vsub.s32 1, %v49
  %v51 = vrot.slane %v33, %v50
  %v52 = vcombine.low %v39, %v43
  %v54 = vunpack.c.l.s4 1983009808
  %v55 = vunpack.c.0.s8 %v54
  %v56 = vlaneseq
  %v57 = vshrl.u32 %v56, 7
  %v58 = vsub.s32 %v55, %v57
  %v59 = vrot.slane %v52, %v58
  %v60 = vcombine.low %v47, %v51
  %v62 = vunpack.c.l.s4 1983009808
  %v63 = vunpack.c.0.s8 %v62
  %v64 = vlaneseq
  %v65 = vshrl.u32 %v64, 7
  %v66 = vsub.s32 %v63, %v65
  %v67 = vrot.slane %v60, %v66
  %v70 = vadd.f32 %v22, %v59
  %v71 = vadd.f32 %v24, %v67
  %vm72 = vcmask 1041408
  %vm73 = vcmask 519170
  %vm74 = vmor %vm73, %vm72
  %75 = vst.msk [vmem:[%s2] sm:$0xf] %vm74, %v70
  %76 = vst.msk [vmem:[%s2 + $0x4] sm:$0xf] %vm74, %v71
  %s77 = scalar_lea.vmem %s1, 4
  %v78 = vld [vmem:[%s77] sm:$0x3]
  %v79 = vld [vmem:[%s77 + $0x2] sm:$0x3]
  %v82 = vlaneseq
  %v83 = vshrl.u32 %v82, 7
  %v84 = vsub.s32 0, %v83
  %v85 = vrot.slane %v78, %v84
  %v86 = vlaneseq
  %v87 = vshrl.u32 %v86, 7
  %v88 = vsub.s32 1, %v87
  %v89 = vrot.slane %v78, %v88
  %v90 = vlaneseq
  %v91 = vshrl.u32 %v90, 7
  %v92 = vsub.s32 0, %v91
  %v93 = vrot.slane %v79, %v92
  %v94 = vlaneseq
  %v95 = vshrl.u32 %v94, 7
  %v96 = vsub.s32 1, %v95
  %v97 = vrot.slane %v79, %v96
  %v98 = vcombine.low %v85, %v89
  %v100 = vunpack.c.l.s4 1983009808
  %v101 = vunpack.c.0.s8 %v100
  %v102 = vlaneseq
  %v103 = vshrl.u32 %v102, 7
  %v104 = vsub.s32 %v101, %v103
  %v105 = vrot.slane %v98, %v104
  %v106 = vcombine.low %v93, %v97
  %v108 = vunpack.c.l.s4 1983009808
  %v109 = vunpack.c.0.s8 %v108
  %v110 = vlaneseq
  %v111 = vshrl.u32 %v110, 7
  %v112 = vsub.s32 %v109, %v111
  %v113 = vrot.slane %v106, %v112
  %v116 = vmul.f32 %v29, %v105
  %v117 = vmul.f32 %v31, %v113
  %s118 = scalar_lea.vmem %s2, 8
  %119 = vst.msk [vmem:[%s118] sm:$0xf] %vm74, %v116
  %120 = vst.msk [vmem:[%s118 + $0x4] sm:$0xf] %vm74, %v117
  // Predicated region
  $region10: #{_forward_impl.1} parent=0 // pred_check
    _
  $region11: #{_forward_impl.1} parent=0 // pred_check_branch
    %122 = sbr.rel (0) target = $region13
  $region12: #{_forward_impl.1} parent=0 // pred_region
    _
  $region13: #{_forward_impl.1} parent=0 // pred_fallthru
    _
  // Predicated region
  $region14: #{_forward_impl.1} parent=0 // pred_check
    _
  $region15: #{_forward_impl.1} parent=0 // pred_check_branch
    %124 = sbr.rel (0) target = $region17
  $region16: #{_forward_impl.1} parent=0 // pred_region
    _
  $region17: #{_forward_impl.1} parent=0 // pred_fallthru
    _

</llo_original>
